<compile_context>
chip_gen: v6e
topology: v6e:2x2x1
jax: 0.10.0
libtpu: 0.0.40
codegen_flags: <defaults>
</compile_context>

<pallas_src>
import jax
import jax.numpy as jnp
from jax.experimental import pallas as pl
from jax.experimental.pallas import tpu as pltpu


def _round_up(v, m):
    return ((v + m - 1) // m) * m


# -----------------------------------------------------------------------------
# Kernels
# -----------------------------------------------------------------------------
def _fc2_and_heads(h1, w2_ref, b2_ref, wh_ref, bh_ref, out_ref):
    """FC2 + ReLU + fused lane-dense (cls | reg) head; h1 has bias+ReLU applied."""
    h2 = jnp.dot(h1.astype(w2_ref.dtype), w2_ref[...],
                 preferred_element_type=jnp.float32) + b2_ref[...]
    h2 = jnp.maximum(h2, 0.0)
    out_ref[...] = (jnp.dot(h2.astype(wh_ref.dtype), wh_ref[...],
                            preferred_element_type=jnp.float32) + bh_ref[...])


def _kernel_resident(x_ref, w1_ref, b1_ref, w2_ref, b2_ref, wh_ref, bh_ref,
                     out_ref):
    """1-D grid over row tiles; w1 fully VMEM-resident (streams from HBM once)."""
    h1 = jnp.dot(x_ref[...].astype(w1_ref.dtype), w1_ref[...],
                 preferred_element_type=jnp.float32)
    h1 = jnp.maximum(h1 + b1_ref[...], 0.0)
    _fc2_and_heads(h1, w2_ref, b2_ref, wh_ref, bh_ref, out_ref)


def _kernel_streamed(x_ref, w1_ref, b1_ref, w2_ref, b2_ref, wh_ref, bh_ref,
                     out_ref, acc_ref):
    """2-D grid (row tiles, K tiles); FC1 partials in an f32 VMEM accumulator."""
    k = pl.program_id(1)

    @pl.when(k == 0)
    def _():
        acc_ref[...] = jnp.zeros_like(acc_ref)

    acc_ref[...] += jnp.dot(x_ref[...].astype(w1_ref.dtype), w1_ref[...],
                            preferred_element_type=jnp.float32)

    @pl.when(k == pl.num_programs(1) - 1)
    def _():
        h1 = jnp.maximum(acc_ref[...] + b1_ref[...], 0.0)
        _fc2_and_heads(h1, w2_ref, b2_ref, wh_ref, bh_ref, out_ref)


# -----------------------------------------------------------------------------
# One-time weight preparation (hoisted out of the per-call hot path)
# -----------------------------------------------------------------------------
def prepare_params(params, compute_dtype=jnp.bfloat16):
    """Pad / cast / fuse the head weights once; reuse the result across calls.

    params: dict with w1, b1, w2, b2, wc, bc, wr, br; weights stored (in, out).
    NOTE: PyTorch nn.Linear stores weights (out, in) -- transpose when ingesting
    a real checkpoint, or results will be silently wrong.
    """
    w1, b1 = params["w1"], params["b1"]
    w2, b2 = params["w2"], params["b2"]
    wc, bc = params["wc"], params["bc"]
    wr, br = params["wr"], params["br"]

    k_in, fc_dim = w1.shape
    cls_out, reg_out = wc.shape[1], wr.shape[1]

    k_p = _round_up(k_in, 128)
    fc_p = _round_up(fc_dim, 128)
    head_p = _round_up(cls_out + reg_out, 128)

    def pad2(a, rows, cols, dtype):
        a = jnp.asarray(a, dtype)
        if a.shape != (rows, cols):
            a = jnp.pad(a, ((0, rows - a.shape[0]), (0, cols - a.shape[1])))
        return a

    return dict(
        w1=pad2(w1, k_p, fc_p, compute_dtype),
        b1=pad2(jnp.reshape(b1, (1, -1)), 1, fc_p, jnp.float32),
        w2=pad2(w2, fc_p, fc_p, compute_dtype),
        b2=pad2(jnp.reshape(b2, (1, -1)), 1, fc_p, jnp.float32),
        # cls and reg heads fused into one lane-dense weight (single MXU pass).
        wh=pad2(jnp.concatenate([wc, wr], axis=1), fc_p, head_p, compute_dtype),
        bh=pad2(jnp.concatenate([jnp.reshape(bc, (1, -1)),
                                 jnp.reshape(br, (1, -1))], axis=1),
                1, head_p, jnp.float32),
        meta=dict(k_in=int(k_in), fc_dim=int(fc_dim),
                  cls_out=int(cls_out), reg_out=int(reg_out),
                  k_p=int(k_p), fc_p=int(fc_p), head_p=int(head_p),
                  compute_dtype=jnp.dtype(compute_dtype)),
    )


# -----------------------------------------------------------------------------
# Tiling / VMEM heuristics
# -----------------------------------------------------------------------------
def _physical_vmem_bytes():
    try:
        info = pltpu.get_tpu_info()
        v = getattr(info, "vmem_capacity_bytes", None)
        if v:
            return int(v)
    except Exception:
        pass
    return 64 << 20  # conservative default (v7x-sized per-core VMEM)


def _tm_candidates(n):
    n16 = _round_up(n, 16)
    cands = []
    if n > 16:
        # aim for >= 2 row tiles so the "parallel" axis can use both v7x TCs
        cands.append(min(512, _round_up((n + 1) // 2, 16)))
    cands.append(min(512, n16))
    cands += [256, 128, 64, 32, 16]
    out, seen = [], set()
    for t in cands:
        t = max(16, min(t, n16))
        if t not in seen:
            seen.add(t)
            out.append(t)
    return out


def _resident_vmem(tm, k_p, fc_p, head_p, w):
    # conservative: assume default double buffering even for resident operands
    weights = 2 * (k_p * fc_p + fc_p * fc_p + fc_p * head_p) * w
    biases = 2 * 8 * (2 * fc_p + head_p) * 4
    x_buf = 2 * tm * k_p * 4                 # f32 input, double buffered
    out_buf = 2 * tm * head_p * 4
    scratch = tm * (fc_p * (8 + 2 * w) + head_p * 4)   # h1/h2 f32 + bf16 casts
    return weights + biases + x_buf + out_buf + scratch


def _streamed_vmem(tm, tk, fc_p, head_p, w):
    w1_buf = 2 * tk * fc_p * w
    weights = 2 * (fc_p * fc_p + fc_p * head_p) * w
    biases = 2 * 8 * (2 * fc_p + head_p) * 4
    x_buf = 2 * tm * tk * 4
    acc = tm * fc_p * 4
    out_buf = 2 * tm * head_p * 4
    scratch = tm * (fc_p * (4 + 2 * w) + head_p * 4)
    return w1_buf + weights + biases + x_buf + acc + out_buf + scratch


def _choose_tiling(n, k_p, fc_p, head_p, w, budget):
    cands = _tm_candidates(n)
    # Prefer the resident-w1 design: w1 streams from HBM exactly once.
    for tm in cands:
        if _resident_vmem(tm, k_p, fc_p, head_p, w) <= budget:
            return "resident", tm, k_p
    # Otherwise stream w1 in (tk, fc_p) slabs; tk must divide k_p (zero padding).
    tk_divs = [d for d in range(k_p, 127, -128) if k_p % d == 0]
    best = None
    for tm in cands:
        for tk in tk_divs:
            if _streamed_vmem(tm, tk, fc_p, head_p, w) <= budget:
                if tk >= 512:
                    return "streamed", tm, tk
                if best is None:
                    best = ("streamed", tm, tk)
                break
    return best if best is not None else ("streamed", 16, 128)


# -----------------------------------------------------------------------------
# Forward
# -----------------------------------------------------------------------------
def bbox_head_forward(x_nchw, prepared, *, vmem_budget_bytes=None):
    """Shared2FCBBoxHead forward.

    x_nchw: (N, C, H, W) float32 ROI features.
    prepared: output of prepare_params (call once, reuse).
    Returns (cls_score (N, num_classes+1), bbox_pred (N, 4*num_classes)).
    """
    meta = prepared["meta"]
    k_in = meta["k_in"]
    cls_out, reg_out = meta["cls_out"], meta["reg_out"]
    k_p, fc_p, head_p = meta["k_p"], meta["fc_p"], meta["head_p"]
    w = meta["compute_dtype"].itemsize

    n = x_nchw.shape[0]
    x_flat = jnp.asarray(x_nchw, jnp.float32).reshape(n, -1)   # == torch flatten(1)
    assert x_flat.shape[1] == k_in, "feature dim mismatch with prepared params"

    budget = vmem_budget_bytes
    if budget is None:
        budget = min(int(_physical_vmem_bytes() * 3 // 4), 100 << 20)

    mode, tm, tk = _choose_tiling(n, k_p, fc_p, head_p, w, budget)
    n_p = _round_up(n, tm)
    if x_flat.shape != (n_p, k_p):
        x_flat = jnp.pad(x_flat, ((0, n_p - n), (0, k_p - k_in)))

    n_tiles = n_p // tm
    flops = 2 * n_p * (k_p * fc_p + fc_p * fc_p + fc_p * head_p)
    w1_streams = 1 if mode == "resident" else n_tiles
    bytes_accessed = (n_p * k_p * 4                          # x (f32, read once)
                      + w1_streams * k_p * fc_p * w          # w1
                      + (fc_p * fc_p + fc_p * head_p) * w    # w2 + fused head W
                      + (2 * fc_p + head_p) * 4              # biases
                      + n_p * head_p * 4)                    # output writeback

    args = (x_flat, prepared["w1"], prepared["b1"], prepared["w2"],
            prepared["b2"], prepared["wh"], prepared["bh"])

    def run(single_buffer_resident):
        res_kw = (dict(pipeline_mode=pl.Buffered(1))
                  if single_buffer_resident else {})

        if mode == "resident":
            grid = (n_tiles,)
            in_specs = [
                pl.BlockSpec((tm, k_p), lambda i: (i, 0)),               # x tile
                pl.BlockSpec((k_p, fc_p), lambda i: (0, 0), **res_kw),   # w1 (resident)
                pl.BlockSpec((1, fc_p), lambda i: (0, 0), **res_kw),     # b1
                pl.BlockSpec((fc_p, fc_p), lambda i: (0, 0), **res_kw),  # w2
                pl.BlockSpec((1, fc_p), lambda i: (0, 0), **res_kw),     # b2
                pl.BlockSpec((fc_p, head_p), lambda i: (0, 0), **res_kw),  # head W
                pl.BlockSpec((1, head_p), lambda i: (0, 0), **res_kw),     # head b
            ]
            out_specs = pl.BlockSpec((tm, head_p), lambda i: (i, 0))
            scratch_shapes = []
            kernel = _kernel_resident
            dims = ("parallel",)
        else:
            grid = (n_tiles, k_p // tk)
            in_specs = [
                pl.BlockSpec((tm, tk), lambda i, k: (i, k)),             # x tile
                pl.BlockSpec((tk, fc_p), lambda i, k: (k, 0)),           # w1 slab
                pl.BlockSpec((1, fc_p), lambda i, k: (0, 0), **res_kw),
                pl.BlockSpec((fc_p, fc_p), lambda i, k: (0, 0), **res_kw),
                pl.BlockSpec((1, fc_p), lambda i, k: (0, 0), **res_kw),
                pl.BlockSpec((fc_p, head_p), lambda i, k: (0, 0), **res_kw),
                pl.BlockSpec((1, head_p), lambda i, k: (0, 0), **res_kw),
            ]
            out_specs = pl.BlockSpec((tm, head_p), lambda i, k: (i, 0))
            scratch_shapes = [pltpu.VMEM((tm, fc_p), jnp.float32)]
            kernel = _kernel_streamed
            dims = ("parallel", "arbitrary")

        call = pl.pallas_call(
            kernel,
            out_shape=jax.ShapeDtypeStruct((n_p, head_p), jnp.float32),
            grid_spec=pltpu.PrefetchScalarGridSpec(
                num_scalar_prefetch=0,
                grid=grid,
                in_specs=in_specs,
                out_specs=out_specs,
                scratch_shapes=scratch_shapes,
            ),
            compiler_params=pltpu.CompilerParams(
                dimension_semantics=dims,
                vmem_limit_bytes=int(budget),
            ),
            cost_estimate=pl.CostEstimate(flops=int(flops), transcendentals=0,
                                          bytes_accessed=int(bytes_accessed)),
        )
        return jax.block_until_ready(call(*args))

    try:
        out = run(single_buffer_resident=True)
    except Exception:
        # pl.Buffered(1) not accepted by this jax/libtpu build; the VMEM budget
        # already assumes double-buffered resident operands, so fall back.
        out = run(single_buffer_resident=False)

    cls_score = out[:n, :cls_out]
    bbox_pred = out[:n, cls_out:cls_out + reg_out]
    return cls_score, bbox_pred


# -----------------------------------------------------------------------------
# Synthetic params / reference
# -----------------------------------------------------------------------------
def _init_params(key, in_dim, fc_dim, num_classes, reg_class_agnostic=False):
    """Deterministic synthetic parameters (shapes follow Shared2FCBBoxHead)."""
    ks = jax.random.split(key, 8)
    cls_out = num_classes + 1
    reg_out = 4 if reg_class_agnostic else 4 * num_classes

    def lin(kw, kb, fan_in, fan_out):
        # weights stored (in, out) so the kernel right-multiplies
        w = (jax.random.normal(kw, (fan_in, fan_out), jnp.float32)
             * (1.0 / jnp.sqrt(fan_in)))
        b = jax.random.normal(kb, (1, fan_out), jnp.float32) * 0.01
        return w, b

    w1, b1 = lin(ks[0], ks[1], in_dim, fc_dim)
    w2, b2 = lin(ks[2], ks[3], fc_dim, fc_dim)
    wc, bc = lin(ks[4], ks[5], fc_dim, cls_out)
    wr, br = lin(ks[6], ks[7], fc_dim, reg_out)
    return dict(w1=w1, b1=b1, w2=w2, b2=b2, wc=wc, bc=bc, wr=wr, br=br)


def _reference(x, p, cast=None):
    """Plain-JAX forward.  cast=jnp.bfloat16 mimics the kernel's bf16 operands."""
    if cast is None:
        c = lambda a: a
    else:
        c = lambda a: a.astype(cast).astype(jnp.float32)
    xf = c(x.reshape(x.shape[0], -1))
    h = jnp.maximum(xf @ c(p["w1"]) + p["b1"], 0.0)
    h = jnp.maximum(c(h) @ c(p["w2"]) + p["b2"], 0.0)
    cls = c(h) @ c(p["wc"]) + p["bc"]
    reg = c(h) @ c(p["wr"]) + p["br"]
    return cls, reg


if __name__ == "__main__":
    # Small, module-consistent shapes: 8 ROIs, 4 channels, 7x7 ROI-align output,
    # 32-dim shared FCs, 4 foreground classes (class-specific regression).
    N, C, H, W = 8, 4, 7, 7
    FC_DIM = 32
    NUM_CLASSES = 4

    key = jax.random.PRNGKey(0)
    kx, kp = jax.random.split(key)
    x = jax.random.normal(kx, (N, C, H, W), jnp.float32)
    params = _init_params(kp, C * H * W, FC_DIM, NUM_CLASSES)

    prepared = prepare_params(params)            # one-time prep; cache & reuse
    cls_score, bbox_pred = bbox_head_forward(x, prepared)
    jax.block_until_ready((cls_score, bbox_pred))

    assert cls_score.shape == (N, NUM_CLASSES + 1)
    assert bbox_pred.shape == (N, 4 * NUM_CLASSES)

    # Tight check against a bf16-operand reference (same math as the kernel).
    ref_cls_bf, ref_reg_bf = _reference(x, params, cast=jnp.bfloat16)
    assert jnp.allclose(cls_score, ref_cls_bf, atol=2e-3, rtol=2e-3)
    assert jnp.allclose(bbox_pred, ref_reg_bf, atol=2e-3, rtol=2e-3)

    # Loose check against the full-precision module math (bf16 weight cast).
    ref_cls, ref_reg = _reference(x, params)
    assert jnp.allclose(cls_score, ref_cls, atol=8e-2, rtol=8e-2)
    assert jnp.allclose(bbox_pred, ref_reg, atol=8e-2, rtol=8e-2)

    # TODO(synk): get_bboxes/regress_by_class depend on mmdet's bbox_coder and
    # the BatchedNMS TensorRT plugin; only the module forward hot path is
    # kernelized here.
    print("KERNEL_OK")
</pallas_src>

<mosaic_0001>
module attributes {stable_mosaic.version = 11 : i64} {
  func.func @_kernel_resident(%arg0: i32, %arg1: memref<16x256xf32, #tpu.memory_space<vmem>>, %arg2: memref<256x128xbf16, #tpu.memory_space<vmem>>, %arg3: memref<1x128xf32, #tpu.memory_space<vmem>>, %arg4: memref<128x128xbf16, #tpu.memory_space<vmem>>, %arg5: memref<1x128xf32, #tpu.memory_space<vmem>>, %arg6: memref<128x128xbf16, #tpu.memory_space<vmem>>, %arg7: memref<1x128xf32, #tpu.memory_space<vmem>>, %arg8: memref<16x128xf32, #tpu.memory_space<vmem>>) attributes {dimension_semantics = [#tpu.dimension_semantics<parallel>], iteration_bounds = array<i64: 1>, scalar_prefetch = 0 : i64, scratch_operands = 0 : i64, tpu.core_type = #tpu.core_type<tc>, window_params = [{transform_indices = @transform_0, window_bounds = array<i64: 16, 256>}, {pipeline_mode = #tpu.pipeline_mode<synchronous>, transform_indices = @transform_1, window_bounds = array<i64: 256, 128>}, {pipeline_mode = #tpu.pipeline_mode<synchronous>, transform_indices = @transform_2, window_bounds = array<i64: 1, 128>}, {pipeline_mode = #tpu.pipeline_mode<synchronous>, transform_indices = @transform_3, window_bounds = array<i64: 128, 128>}, {pipeline_mode = #tpu.pipeline_mode<synchronous>, transform_indices = @transform_4, window_bounds = array<i64: 1, 128>}, {pipeline_mode = #tpu.pipeline_mode<synchronous>, transform_indices = @transform_5, window_bounds = array<i64: 128, 128>}, {pipeline_mode = #tpu.pipeline_mode<synchronous>, transform_indices = @transform_6, window_bounds = array<i64: 1, 128>}, {transform_indices = @transform_7, window_bounds = array<i64: 16, 128>}]} {
    %c0 = arith.constant 0 : index
    %c0_0 = arith.constant 0 : index
    %0 = vector.load %arg1[%c0, %c0_0] : memref<16x256xf32, #tpu.memory_space<vmem>>, vector<16x256xf32>
    %1 = arith.truncf %0 : vector<16x256xf32> to vector<16x256xbf16>
    %c0_1 = arith.constant 0 : index
    %c0_2 = arith.constant 0 : index
    %2 = vector.load %arg2[%c0_1, %c0_2] : memref<256x128xbf16, #tpu.memory_space<vmem>>, vector<256x128xbf16>
    %cst = arith.constant dense<0.000000e+00> : vector<16x128xf32>
    %3 = tpu.matmul %1, %2, %cst {dimension_numbers = #tpu.dot_dimension_numbers<[1], [0], [0], [1], [0, 0, 1, 1], [], []>} : vector<16x256xbf16>, vector<256x128xbf16>, vector<16x128xf32> -> vector<16x128xf32>
    %c0_3 = arith.constant 0 : index
    %c0_4 = arith.constant 0 : index
    %4 = vector.load %arg3[%c0_3, %c0_4] : memref<1x128xf32, #tpu.memory_space<vmem>>, vector<1x128xf32>
    %5 = vector.broadcast %4 : vector<1x128xf32> to vector<16x128xf32>
    %6 = arith.addf %3, %5 : vector<16x128xf32>
    %cst_5 = arith.constant 0.000000e+00 : f32
    %7 = vector.broadcast %cst_5 : f32 to vector<16x128xf32>
    %8 = arith.maximumf %6, %7 : vector<16x128xf32>
    %9 = arith.truncf %8 : vector<16x128xf32> to vector<16x128xbf16>
    %c0_6 = arith.constant 0 : index
    %c0_7 = arith.constant 0 : index
    %10 = vector.load %arg4[%c0_6, %c0_7] : memref<128x128xbf16, #tpu.memory_space<vmem>>, vector<128x128xbf16>
    %cst_8 = arith.constant dense<0.000000e+00> : vector<16x128xf32>
    %11 = tpu.matmul %9, %10, %cst_8 {dimension_numbers = #tpu.dot_dimension_numbers<[1], [0], [0], [1], [0, 0, 1, 1], [], []>} : vector<16x128xbf16>, vector<128x128xbf16>, vector<16x128xf32> -> vector<16x128xf32>
    %c0_9 = arith.constant 0 : index
    %c0_10 = arith.constant 0 : index
    %12 = vector.load %arg5[%c0_9, %c0_10] : memref<1x128xf32, #tpu.memory_space<vmem>>, vector<1x128xf32>
    %13 = vector.broadcast %12 : vector<1x128xf32> to vector<16x128xf32>
    %14 = arith.addf %11, %13 : vector<16x128xf32>
    %cst_11 = arith.constant 0.000000e+00 : f32
    %15 = vector.broadcast %cst_11 : f32 to vector<16x128xf32>
    %16 = arith.maximumf %14, %15 : vector<16x128xf32>
    %17 = arith.truncf %16 : vector<16x128xf32> to vector<16x128xbf16>
    %c0_12 = arith.constant 0 : index
    %c0_13 = arith.constant 0 : index
    %18 = vector.load %arg6[%c0_12, %c0_13] : memref<128x128xbf16, #tpu.memory_space<vmem>>, vector<128x128xbf16>
    %cst_14 = arith.constant dense<0.000000e+00> : vector<16x128xf32>
    %19 = tpu.matmul %17, %18, %cst_14 {dimension_numbers = #tpu.dot_dimension_numbers<[1], [0], [0], [1], [0, 0, 1, 1], [], []>} : vector<16x128xbf16>, vector<128x128xbf16>, vector<16x128xf32> -> vector<16x128xf32>
    %c0_15 = arith.constant 0 : index
    %c0_16 = arith.constant 0 : index
    %20 = vector.load %arg7[%c0_15, %c0_16] : memref<1x128xf32, #tpu.memory_space<vmem>>, vector<1x128xf32>
    %21 = vector.broadcast %20 : vector<1x128xf32> to vector<16x128xf32>
    %22 = arith.addf %19, %21 : vector<16x128xf32>
    %c0_17 = arith.constant 0 : index
    %c0_18 = arith.constant 0 : index
    %23 = vector.load %arg8[%c0_17, %c0_18] : memref<16x128xf32, #tpu.memory_space<vmem>>, vector<16x128xf32>
    tpu.vector_store %arg8[%c0_17, %c0_18], %22 {strides = array<i32>} : memref<16x128xf32, #tpu.memory_space<vmem>>, vector<16x128xf32>,
    return
  }
  func.func @transform_0(%arg0: i32) -> (i32, i32) {
    %c0_i32 = arith.constant 0 : i32
    %c0_i32_0 = arith.constant 0 : i32
    return %arg0, %c0_i32 : i32, i32
  }
  func.func @transform_1(%arg0: i32) -> (i32, i32) {
    %c0_i32 = arith.constant 0 : i32
    %c0_i32_0 = arith.constant 0 : i32
    %c0_i32_1 = arith.constant 0 : i32
    return %c0_i32, %c0_i32_0 : i32, i32
  }
  func.func @transform_2(%arg0: i32) -> (i32, i32) {
    %c0_i32 = arith.constant 0 : i32
    %c0_i32_0 = arith.constant 0 : i32
    %c0_i32_1 = arith.constant 0 : i32
    return %c0_i32, %c0_i32_0 : i32, i32
  }
  func.func @transform_3(%arg0: i32) -> (i32, i32) {
    %c0_i32 = arith.constant 0 : i32
    %c0_i32_0 = arith.constant 0 : i32
    %c0_i32_1 = arith.constant 0 : i32
    return %c0_i32, %c0_i32_0 : i32, i32
  }
  func.func @transform_4(%arg0: i32) -> (i32, i32) {
    %c0_i32 = arith.constant 0 : i32
    %c0_i32_0 = arith.constant 0 : i32
    %c0_i32_1 = arith.constant 0 : i32
    return %c0_i32, %c0_i32_0 : i32, i32
  }
  func.func @transform_5(%arg0: i32) -> (i32, i32) {
    %c0_i32 = arith.constant 0 : i32
    %c0_i32_0 = arith.constant 0 : i32
    %c0_i32_1 = arith.constant 0 : i32
    return %c0_i32, %c0_i32_0 : i32, i32
  }
  func.func @transform_6(%arg0: i32) -> (i32, i32) {
    %c0_i32 = arith.constant 0 : i32
    %c0_i32_0 = arith.constant 0 : i32
    %c0_i32_1 = arith.constant 0 : i32
    return %c0_i32, %c0_i32_0 : i32, i32
  }
  func.func @transform_7(%arg0: i32) -> (i32, i32) {
    %c0_i32 = arith.constant 0 : i32
    %c0_i32_0 = arith.constant 0 : i32
    return %arg0, %c0_i32 : i32, i32
  }
}

module attributes {stable_mosaic.version = 11 : i64} {
  func.func @_kernel_resident(%arg0: i32, %arg1: memref<16x256xf32, #tpu.memory_space<vmem>>, %arg2: memref<256x128xbf16, #tpu.memory_space<vmem>>, %arg3: memref<1x128xf32, #tpu.memory_space<vmem>>, %arg4: memref<128x128xbf16, #tpu.memory_space<vmem>>, %arg5: memref<1x128xf32, #tpu.memory_space<vmem>>, %arg6: memref<128x128xbf16, #tpu.memory_space<vmem>>, %arg7: memref<1x128xf32, #tpu.memory_space<vmem>>, %arg8: memref<16x128xf32, #tpu.memory_space<vmem>>) attributes {dimension_semantics = [#tpu.dimension_semantics<parallel>], iteration_bounds = array<i64: 1>, scalar_prefetch = 0 : i64, scratch_operands = 0 : i64, tpu.core_type = #tpu.core_type<tc>, window_params = [{transform_indices = @transform_0, window_bounds = array<i64: 16, 256>}, {pipeline_mode = #tpu.pipeline_mode<synchronous>, transform_indices = @transform_1, window_bounds = array<i64: 256, 128>}, {pipeline_mode = #tpu.pipeline_mode<synchronous>, transform_indices = @transform_2, window_bounds = array<i64: 1, 128>}, {pipeline_mode = #tpu.pipeline_mode<synchronous>, transform_indices = @transform_3, window_bounds = array<i64: 128, 128>}, {pipeline_mode = #tpu.pipeline_mode<synchronous>, transform_indices = @transform_4, window_bounds = array<i64: 1, 128>}, {pipeline_mode = #tpu.pipeline_mode<synchronous>, transform_indices = @transform_5, window_bounds = array<i64: 128, 128>}, {pipeline_mode = #tpu.pipeline_mode<synchronous>, transform_indices = @transform_6, window_bounds = array<i64: 1, 128>}, {transform_indices = @transform_7, window_bounds = array<i64: 16, 128>}]} {
    %c0 = arith.constant 0 : index
    %c0_0 = arith.constant 0 : index
    %0 = vector.load %arg1[%c0, %c0_0] : memref<16x256xf32, #tpu.memory_space<vmem>>, vector<16x256xf32>
    %1 = arith.truncf %0 : vector<16x256xf32> to vector<16x256xbf16>
    %c0_1 = arith.constant 0 : index
    %c0_2 = arith.constant 0 : index
    %2 = vector.load %arg2[%c0_1, %c0_2] : memref<256x128xbf16, #tpu.memory_space<vmem>>, vector<256x128xbf16>
    %cst = arith.constant dense<0.000000e+00> : vector<16x128xf32>
    %3 = tpu.matmul %1, %2, %cst {dimension_numbers = #tpu.dot_dimension_numbers<[1], [0], [0], [1], [0, 0, 1, 1], [], []>} : vector<16x256xbf16>, vector<256x128xbf16>, vector<16x128xf32> -> vector<16x128xf32>
    %c0_3 = arith.constant 0 : index
    %c0_4 = arith.constant 0 : index
    %4 = vector.load %arg3[%c0_3, %c0_4] : memref<1x128xf32, #tpu.memory_space<vmem>>, vector<1x128xf32>
    %5 = vector.broadcast %4 : vector<1x128xf32> to vector<16x128xf32>
    %6 = arith.addf %3, %5 : vector<16x128xf32>
    %cst_5 = arith.constant 0.000000e+00 : f32
    %7 = vector.broadcast %cst_5 : f32 to vector<16x128xf32>
    %8 = arith.maximumf %6, %7 : vector<16x128xf32>
    %9 = arith.truncf %8 : vector<16x128xf32> to vector<16x128xbf16>
    %c0_6 = arith.constant 0 : index
    %c0_7 = arith.constant 0 : index
    %10 = vector.load %arg4[%c0_6, %c0_7] : memref<128x128xbf16, #tpu.memory_space<vmem>>, vector<128x128xbf16>
    %cst_8 = arith.constant dense<0.000000e+00> : vector<16x128xf32>
    %11 = tpu.matmul %9, %10, %cst_8 {dimension_numbers = #tpu.dot_dimension_numbers<[1], [0], [0], [1], [0, 0, 1, 1], [], []>} : vector<16x128xbf16>, vector<128x128xbf16>, vector<16x128xf32> -> vector<16x128xf32>
    %c0_9 = arith.constant 0 : index
    %c0_10 = arith.constant 0 : index
    %12 = vector.load %arg5[%c0_9, %c0_10] : memref<1x128xf32, #tpu.memory_space<vmem>>, vector<1x128xf32>
    %13 = vector.broadcast %12 : vector<1x128xf32> to vector<16x128xf32>
    %14 = arith.addf %11, %13 : vector<16x128xf32>
    %cst_11 = arith.constant 0.000000e+00 : f32
    %15 = vector.broadcast %cst_11 : f32 to vector<16x128xf32>
    %16 = arith.maximumf %14, %15 : vector<16x128xf32>
    %17 = arith.truncf %16 : vector<16x128xf32> to vector<16x128xbf16>
    %c0_12 = arith.constant 0 : index
    %c0_13 = arith.constant 0 : index
    %18 = vector.load %arg6[%c0_12, %c0_13] : memref<128x128xbf16, #tpu.memory_space<vmem>>, vector<128x128xbf16>
    %cst_14 = arith.constant dense<0.000000e+00> : vector<16x128xf32>
    %19 = tpu.matmul %17, %18, %cst_14 {dimension_numbers = #tpu.dot_dimension_numbers<[1], [0], [0], [1], [0, 0, 1, 1], [], []>} : vector<16x128xbf16>, vector<128x128xbf16>, vector<16x128xf32> -> vector<16x128xf32>
    %c0_15 = arith.constant 0 : index
    %c0_16 = arith.constant 0 : index
    %20 = vector.load %arg7[%c0_15, %c0_16] : memref<1x128xf32, #tpu.memory_space<vmem>>, vector<1x128xf32>
    %21 = vector.broadcast %20 : vector<1x128xf32> to vector<16x128xf32>
    %22 = arith.addf %19, %21 : vector<16x128xf32>
    %c0_17 = arith.constant 0 : index
    %c0_18 = arith.constant 0 : index
    %23 = vector.load %arg8[%c0_17, %c0_18] : memref<16x128xf32, #tpu.memory_space<vmem>>, vector<16x128xf32>
    tpu.vector_store %arg8[%c0_17, %c0_18], %22 {strides = array<i32>} : memref<16x128xf32, #tpu.memory_space<vmem>>, vector<16x128xf32>,
    return
  }
  func.func @transform_0(%arg0: i32) -> (i32, i32) {
    %c0_i32 = arith.constant 0 : i32
    %c0_i32_0 = arith.constant 0 : i32
    return %arg0, %c0_i32 : i32, i32
  }
  func.func @transform_1(%arg0: i32) -> (i32, i32) {
    %c0_i32 = arith.constant 0 : i32
    %c0_i32_0 = arith.constant 0 : i32
    %c0_i32_1 = arith.constant 0 : i32
    return %c0_i32, %c0_i32_0 : i32, i32
  }
  func.func @transform_2(%arg0: i32) -> (i32, i32) {
    %c0_i32 = arith.constant 0 : i32
    %c0_i32_0 = arith.constant 0 : i32
    %c0_i32_1 = arith.constant 0 : i32
    return %c0_i32, %c0_i32_0 : i32, i32
  }
  func.func @transform_3(%arg0: i32) -> (i32, i32) {
    %c0_i32 = arith.constant 0 : i32
    %c0_i32_0 = arith.constant 0 : i32
    %c0_i32_1 = arith.constant 0 : i32
    return %c0_i32, %c0_i32_0 : i32, i32
  }
  func.func @transform_4(%arg0: i32) -> (i32, i32) {
    %c0_i32 = arith.constant 0 : i32
    %c0_i32_0 = arith.constant 0 : i32
    %c0_i32_1 = arith.constant 0 : i32
    return %c0_i32, %c0_i32_0 : i32, i32
  }
  func.func @transform_5(%arg0: i32) -> (i32, i32) {
    %c0_i32 = arith.constant 0 : i32
    %c0_i32_0 = arith.constant 0 : i32
    %c0_i32_1 = arith.constant 0 : i32
    return %c0_i32, %c0_i32_0 : i32, i32
  }
  func.func @transform_6(%arg0: i32) -> (i32, i32) {
    %c0_i32 = arith.constant 0 : i32
    %c0_i32_0 = arith.constant 0 : i32
    %c0_i32_1 = arith.constant 0 : i32
    return %c0_i32, %c0_i32_0 : i32, i32
  }
  func.func @transform_7(%arg0: i32) -> (i32, i32) {
    %c0_i32 = arith.constant 0 : i32
    %c0_i32_0 = arith.constant 0 : i32
    return %arg0, %c0_i32 : i32, i32
  }
}

</mosaic_0001>

<llo_original>
// kernel: tpu_custom_call.1
$region0: #{tpu_custom_call.1}
  #allocation0 [shape = 'u32[]', space=smem, size = 0x4, offset = 0x4, fixed_abs, tag = 'smem constant byte address 0x4 - core index']
  #allocation1 [shape = 'u32[144,128]{1,0:T(1,128)}', space=vmem, size = 0x12000, scoped, tag = 'internal scratch']
  %s0 = inlined_call_operand.hbm [shape: f32[16,256], index: 0, kind: input, shape index: {}]
  %s1 = inlined_call_operand.hbm [shape: bf16[256,128], index: 1, kind: input, shape index: {}]
  %s2 = inlined_call_operand.vmem [shape: f32[1,128], index: 2, kind: input, shape index: {}]
  %s3 = inlined_call_operand.hbm [shape: bf16[128,128], index: 3, kind: input, shape index: {}]
  %s4 = inlined_call_operand.vmem [shape: f32[1,128], index: 4, kind: input, shape index: {}]
  %s5 = inlined_call_operand.hbm [shape: bf16[128,128], index: 5, kind: input, shape index: {}]
  %s6 = inlined_call_operand.vmem [shape: f32[1,128], index: 6, kind: input, shape index: {}]
  %s7 = inlined_call_operand.hbm [shape: f32[16,128], index: 7, kind: output, shape index: {}]
  %s8 = sld [smem:[#allocation0]]
  $region54: #{tpu_custom_call.1} parent=0
    _
  %s10 = ssub.s32 1, %s8
  %s11 = scalar_select 0, %s10, %s8
  $region1: #{tpu_custom_call.1} parent=0
    #allocation2 [shape = 'u8[16384]{0}', space=vmem, size = 0x4000, scoped, tag = 'input window, operand 0, single buffered']
    #allocation3 [shape = 's32[1]{0}', space=sflag, size = 0x4, scoped, tag = 'scoped memory for tpu_custom_call.1']
    #allocation4 [shape = 's32[1]{0}', space=sflag, size = 0x4, scoped, tag = 'scoped memory for tpu_custom_call.1']
    #allocation5 [shape = 'u8[65536]{0}', space=vmem, size = 0x10000, scoped, tag = 'input window, operand 1, single buffered']
    #allocation6 [shape = 's32[1]{0}', space=sflag, size = 0x4, scoped, tag = 'scoped memory for tpu_custom_call.1']
    #allocation7 [shape = 'u8[32768]{0}', space=vmem, size = 0x8000, scoped, tag = 'input window, operand 3, single buffered']
    #allocation8 [shape = 'u8[32768]{0}', space=vmem, size = 0x8000, scoped, tag = 'input window, operand 5, single buffered']
    #allocation9 [shape = 's32[1]{0}', space=sflag, size = 0x4, scoped, tag = 'scoped memory for tpu_custom_call.1']
    #allocation10 [shape = 'u8[8192]{0}', space=vmem, size = 0x2000, scoped, tag = 'output window, operand 0, single buffered']
    %12 = vsyncpa [#allocation3], 0
    %13 = vsyncpa [#allocation6], 0
    %14 = vsyncpa [#allocation9], 0
    %15 = vsyncpa [#allocation4], 0
    // Predicated region
    $region2: #{tpu_custom_call.1} parent=1 // pred_check
      _
    $region3: #{tpu_custom_call.1} parent=1 // pred_check_branch
      %17 = sbr.rel (0) target = $region5
    $region4: #{tpu_custom_call.1} parent=1 // pred_region
      %s19 = ssub.s32 512, 512
      %20 = vsyncadd [#allocation3], %s19
      %s21 = sshll.u32 [#allocation2], 4
      %s22 = int_to_ptr.vmem [resolvable:$true] %s21
      %27 = dma.hbm_to_vmem [thread:$0]  %s0, 512, %s22, [#allocation3], 256, 256, 16
    $region5: #{tpu_custom_call.1} parent=1 // pred_fallthru
      _
    // Predicated region
    $region6: #{tpu_custom_call.1} parent=1 // pred_check
      _
    $region7: #{tpu_custom_call.1} parent=1 // pred_check_branch
      %29 = sbr.rel (0) target = $region9
    $region8: #{tpu_custom_call.1} parent=1 // pred_region
      %s31 = ssub.s32 2048, 2048
      %32 = vsyncadd [#allocation6], %s31
      %s33 = sshll.u32 [#allocation5], 4
      %s34 = int_to_ptr.vmem [resolvable:$true] %s33
      %39 = dma.hbm_to_vmem [thread:$0]  %s1, 2048, %s34, [#allocation6], 64, 64, 4
    $region9: #{tpu_custom_call.1} parent=1 // pred_fallthru
      _
    // Predicated region
    $region10: #{tpu_custom_call.1} parent=1 // pred_check
      _
    $region11: #{tpu_custom_call.1} parent=1 // pred_check_branch
      %41 = sbr.rel (0) target = $region13
    $region12: #{tpu_custom_call.1} parent=1 // pred_region
      _
    $region13: #{tpu_custom_call.1} parent=1 // pred_fallthru
      _
    // Predicated region
    $region14: #{tpu_custom_call.1} parent=1 // pred_check
      _
    $region15: #{tpu_custom_call.1} parent=1 // pred_check_branch
      %43 = sbr.rel (0) target = $region17
    $region16: #{tpu_custom_call.1} parent=1 // pred_region
      %s45 = ssub.s32 1024, 1024
      %46 = vsyncadd [#allocation6], %s45
      %s47 = sshll.u32 [#allocation7], 4
      %s48 = int_to_ptr.vmem [resolvable:$true] %s47
      %53 = dma.hbm_to_vmem [thread:$0]  %s3, 1024, %s48, [#allocation6], 64, 64, 4
    $region17: #{tpu_custom_call.1} parent=1 // pred_fallthru
      _
    // Predicated region
    $region18: #{tpu_custom_call.1} parent=1 // pred_check
      _
    $region19: #{tpu_custom_call.1} parent=1 // pred_check_branch
      %55 = sbr.rel (0) target = $region21
    $region20: #{tpu_custom_call.1} parent=1 // pred_region
      _
    $region21: #{tpu_custom_call.1} parent=1 // pred_fallthru
      _
    // Predicated region
    $region22: #{tpu_custom_call.1} parent=1 // pred_check
      _
    $region23: #{tpu_custom_call.1} parent=1 // pred_check_branch
      %57 = sbr.rel (0) target = $region25
    $region24: #{tpu_custom_call.1} parent=1 // pred_region
      %s59 = ssub.s32 1024, 1024
      %60 = vsyncadd [#allocation9], %s59
      %s61 = sshll.u32 [#allocation8], 4
      %s62 = int_to_ptr.vmem [resolvable:$true] %s61
      %67 = dma.hbm_to_vmem [thread:$0]  %s5, 1024, %s62, [#allocation9], 64, 64, 4
    $region25: #{tpu_custom_call.1} parent=1 // pred_fallthru
      _
    // Predicated region
    $region26: #{tpu_custom_call.1} parent=1 // pred_check
      _
    $region27: #{tpu_custom_call.1} parent=1 // pred_check_branch
      %69 = sbr.rel (0) target = $region29
    $region28: #{tpu_custom_call.1} parent=1 // pred_region
      _
    $region29: #{tpu_custom_call.1} parent=1 // pred_fallthru
      _
    // Predicated region
    $region30: #{tpu_custom_call.1} parent=1 // pred_check
      _
    $region31: #{tpu_custom_call.1} parent=1 // pred_check_branch
      %71 = sbr.rel (0) target = $region33
    $region32: #{tpu_custom_call.1} parent=1 // pred_region
      %72 = dma.done [#allocation3], 512
    $region33: #{tpu_custom_call.1} parent=1 // pred_fallthru
      _
    // Predicated region
    $region34: #{tpu_custom_call.1} parent=1 // pred_check
      _
    $region35: #{tpu_custom_call.1} parent=1 // pred_check_branch
      %74 = sbr.rel (0) target = $region37
    $region36: #{tpu_custom_call.1} parent=1 // pred_region
      %75 = dma.done [#allocation6], 2048
    $region37: #{tpu_custom_call.1} parent=1 // pred_fallthru
      _
    // Predicated region
    $region38: #{tpu_custom_call.1} parent=1 // pred_check
      _
    $region39: #{tpu_custom_call.1} parent=1 // pred_check_branch
      %77 = sbr.rel (0) target = $region41
    $region40: #{tpu_custom_call.1} parent=1 // pred_region
      %78 = dma.done [#allocation6], 1024
    $region41: #{tpu_custom_call.1} parent=1 // pred_fallthru
      _
    // Predicated region
    $region42: #{tpu_custom_call.1} parent=1 // pred_check
      _
    $region43: #{tpu_custom_call.1} parent=1 // pred_check_branch
      %80 = sbr.rel (0) target = $region45
    $region44: #{tpu_custom_call.1} parent=1 // pred_region
      %81 = dma.done [#allocation9], 1024
    $region45: #{tpu_custom_call.1} parent=1 // pred_fallthru
      _
    %v83 = vld [vmem:[#allocation2] sm:$0xff]
    %v84 = vld [vmem:[#allocation2 + $0x8] sm:$0xff]
    %v85 = vld [vmem:[#allocation2 + $0x10] sm:$0xff]
    %v86 = vld [vmem:[#allocation2 + $0x18] sm:$0xff]
    %v87 = vpack.c.bf16 %v85, %v83
    %v88 = vpack.c.bf16 %v86, %v84
    %v89 = vld [vmem:[#allocation5] sm:$0xf]
    %v90 = vld [vmem:[#allocation5 + $0x4] sm:$0xf]
    %v91 = vld [vmem:[#allocation5 + $0x8] sm:$0xf]
    %v92 = vld [vmem:[#allocation5 + $0xc] sm:$0xf]
    %v93 = vld [vmem:[#allocation5 + $0x10] sm:$0xf]
    %v94 = vld [vmem:[#allocation5 + $0x14] sm:$0xf]
    %v95 = vld [vmem:[#allocation5 + $0x18] sm:$0xf]
    %v96 = vld [vmem:[#allocation5 + $0x1c] sm:$0xf]
    %v97 = vld [vmem:[#allocation5 + $0x20] sm:$0xf]
    %v98 = vld [vmem:[#allocation5 + $0x24] sm:$0xf]
    %v99 = vld [vmem:[#allocation5 + $0x28] sm:$0xf]
    %v100 = vld [vmem:[#allocation5 + $0x2c] sm:$0xf]
    %v101 = vld [vmem:[#allocation5 + $0x30] sm:$0xf]
    %v102 = vld [vmem:[#allocation5 + $0x34] sm:$0xf]
    %v103 = vld [vmem:[#allocation5 + $0x38] sm:$0xf]
    %v104 = vld [vmem:[#allocation5 + $0x3c] sm:$0xf]
    %v105 = vld [vmem:[#allocation5 + $0x40] sm:$0xf]
    %v106 = vld [vmem:[#allocation5 + $0x44] sm:$0xf]
    %v107 = vld [vmem:[#allocation5 + $0x48] sm:$0xf]
    %v108 = vld [vmem:[#allocation5 + $0x4c] sm:$0xf]
    %v109 = vld [vmem:[#allocation5 + $0x50] sm:$0xf]
    %v110 = vld [vmem:[#allocation5 + $0x54] sm:$0xf]
    %v111 = vld [vmem:[#allocation5 + $0x58] sm:$0xf]
    %v112 = vld [vmem:[#allocation5 + $0x5c] sm:$0xf]
    %v113 = vld [vmem:[#allocation5 + $0x60] sm:$0xf]
    %v114 = vld [vmem:[#allocation5 + $0x64] sm:$0xf]
    %v115 = vld [vmem:[#allocation5 + $0x68] sm:$0xf]
    %v116 = vld [vmem:[#allocation5 + $0x6c] sm:$0xf]
    %v117 = vld [vmem:[#allocation5 + $0x70] sm:$0xf]
    %v118 = vld [vmem:[#allocation5 + $0x74] sm:$0xf]
    %v119 = vld [vmem:[#allocation5 + $0x78] sm:$0xf]
    %v120 = vld [vmem:[#allocation5 + $0x7c] sm:$0xf]
    %v121 = vld [vmem:[%s2] sm:$0x1]
    %v123 = vlaneseq
    %v124 = vshrl.u32 %v123, 7
    %v125 = vsub.s32 0, %v124
    %v126 = vrot.slane %v121, %v125
    %v160 = vunpack.c.l.b16 %v89
    %v161 = vunpack.c.l.b16 %v90
    %v162 = vunpack.c.l.b16 %v91
    %v163 = vunpack.c.l.b16 %v92
    %v164 = vunpack.c.l.b16 %v93
    %v165 = vunpack.c.l.b16 %v94
    %v166 = vunpack.c.l.b16 %v95
    %v167 = vunpack.c.l.b16 %v96
    %v168 = vunpack.c.l.b16 %v97
    %v169 = vunpack.c.l.b16 %v98
    %v170 = vunpack.c.l.b16 %v99
    %v171 = vunpack.c.l.b16 %v100
    %v172 = vunpack.c.l.b16 %v101
    %v173 = vunpack.c.l.b16 %v102
    %v174 = vunpack.c.l.b16 %v103
    %v175 = vunpack.c.l.b16 %v104
    %v176 = vunpack.c.l.b16 %v105
    %v177 = vunpack.c.l.b16 %v106
    %v178 = vunpack.c.l.b16 %v107
    %v179 = vunpack.c.l.b16 %v108
    %v180 = vunpack.c.l.b16 %v109
    %v181 = vunpack.c.l.b16 %v110
    %v182 = vunpack.c.l.b16 %v111
    %v183 = vunpack.c.l.b16 %v112
    %v184 = vunpack.c.l.b16 %v113
    %v185 = vunpack.c.l.b16 %v114
    %v186 = vunpack.c.l.b16 %v115
    %v187 = vunpack.c.l.b16 %v116
    %v188 = vunpack.c.l.b16 %v117
    %v189 = vunpack.c.l.b16 %v118
    %v190 = vunpack.c.l.b16 %v119
    %v191 = vunpack.c.l.b16 %v120
    %v192 = vpack.c.b16 %v161, %v160
    %v193 = vpack.c.b16 %v163, %v162
    %v194 = vpack.c.b16 %v165, %v164
    %v195 = vpack.c.b16 %v167, %v166
    %v196 = vpack.c.b16 %v169, %v168
    %v197 = vpack.c.b16 %v171, %v170
    %v198 = vpack.c.b16 %v173, %v172
    %v199 = vpack.c.b16 %v175, %v174
    %v200 = vpack.c.b16 %v177, %v176
    %v201 = vpack.c.b16 %v179, %v178
    %v202 = vpack.c.b16 %v181, %v180
    %v203 = vpack.c.b16 %v183, %v182
    %v204 = vpack.c.b16 %v185, %v184
    %v205 = vpack.c.b16 %v187, %v186
    %v206 = vpack.c.b16 %v189, %v188
    %v207 = vpack.c.b16 %v191, %v190
    %224 = vmatprep.subr.bf16.mxu0 0
    %225 = vmatpush1.bf16.msra.mxu0 %v199
    %226 = vmatprep.subr.bf16.mxu0 0
    %227 = vmatpush1.bf16.msra.mxu0 %v198
    %228 = vmatprep.subr.bf16.mxu0 0
    %229 = vmatpush1.bf16.msra.mxu0 %v197
    %230 = vmatprep.subr.bf16.mxu0 0
    %231 = vmatpush1.bf16.msra.mxu0 %v196
    %232 = vmatprep.subr.bf16.mxu0 0
    %233 = vmatpush1.bf16.msra.mxu0 %v195
    %234 = vmatprep.subr.bf16.mxu0 0
    %235 = vmatpush1.bf16.msra.mxu0 %v194
    %236 = vmatprep.subr.bf16.mxu0 0
    %237 = vmatpush1.bf16.msra.mxu0 %v193
    %238 = vmatprep.subr.bf16.mxu0 0
    %239 = vmatpush1.bf16.msra.mxu0 %v192
    %240 = vmatprep.subr.bf16.mxu0 0
    %241 = vmatpush2.bf16.msra.mxu0 %v207
    %242 = vmatprep.subr.bf16.mxu0 0
    %243 = vmatpush2.bf16.msra.mxu0 %v206
    %244 = vmatprep.subr.bf16.mxu0 0
    %245 = vmatpush2.bf16.msra.mxu0 %v205
    %246 = vmatprep.subr.bf16.mxu0 0
    %247 = vmatpush2.bf16.msra.mxu0 %v204
    %248 = vmatprep.subr.bf16.mxu0 0
    %249 = vmatpush2.bf16.msra.mxu0 %v203
    %250 = vmatprep.subr.bf16.mxu0 0
    %251 = vmatpush2.bf16.msra.mxu0 %v202
    %252 = vmatprep.subr.bf16.mxu0 0
    %253 = vmatpush2.bf16.msra.mxu0 %v201
    %254 = vmatprep.subr.bf16.mxu0 0
    %255 = vmatpush2.bf16.msra.mxu0 %v200
    %256 = vmatprep.mubr.bf16.mxu0 %v88
    %257 = vmatmul.mubr.bf16.gmra.mxu0 %v87
    %v258 = vpop.f32.mrf.mxu0
    %v259 = vadd.f32 %v126, %v258
    %v260 = vpop.f32.mrf.mxu0
    %v261 = vpop.f32.mrf.mxu0
    %v262 = vadd.f32 %v126, %v261
    %v263 = vpop.f32.mrf.mxu0
    %264 = vdwg.mxu0
    %v265 = vmax.f32 %v259, 0.0
    %v266 = vmax.f32 %v262, 0.0
    %v267 = vpack.c.bf16 %v266, %v265
    %v268 = vld [vmem:[#allocation7] sm:$0xf]
    %v269 = vld [vmem:[#allocation7 + $0x4] sm:$0xf]
    %v270 = vld [vmem:[#allocation7 + $0x8] sm:$0xf]
    %v271 = vld [vmem:[#allocation7 + $0xc] sm:$0xf]
    %v272 = vld [vmem:[#allocation7 + $0x10] sm:$0xf]
    %v273 = vld [vmem:[#allocation7 + $0x14] sm:$0xf]
    %v274 = vld [vmem:[#allocation7 + $0x18] sm:$0xf]
    %v275 = vld [vmem:[#allocation7 + $0x1c] sm:$0xf]
    %v276 = vld [vmem:[#allocation7 + $0x20] sm:$0xf]
    %v277 = vld [vmem:[#allocation7 + $0x24] sm:$0xf]
    %v278 = vld [vmem:[#allocation7 + $0x28] sm:$0xf]
    %v279 = vld [vmem:[#allocation7 + $0x2c] sm:$0xf]
    %v280 = vld [vmem:[#allocation7 + $0x30] sm:$0xf]
    %v281 = vld [vmem:[#allocation7 + $0x34] sm:$0xf]
    %v282 = vld [vmem:[#allocation7 + $0x38] sm:$0xf]
    %v283 = vld [vmem:[#allocation7 + $0x3c] sm:$0xf]
    %v284 = vld [vmem:[%s4] sm:$0x1]
    %v286 = vlaneseq
    %v287 = vshrl.u32 %v286, 7
    %v288 = vsub.s32 0, %v287
    %v289 = vrot.slane %v284, %v288
    %v307 = vunpack.c.l.b16 %v268
    %v308 = vunpack.c.l.b16 %v269
    %v309 = vunpack.c.l.b16 %v270
    %v310 = vunpack.c.l.b16 %v271
    %v311 = vunpack.c.l.b16 %v272
    %v312 = vunpack.c.l.b16 %v273
    %v313 = vunpack.c.l.b16 %v274
    %v314 = vunpack.c.l.b16 %v275
    %v315 = vunpack.c.l.b16 %v276
    %v316 = vunpack.c.l.b16 %v277
    %v317 = vunpack.c.l.b16 %v278
    %v318 = vunpack.c.l.b16 %v279
    %v319 = vunpack.c.l.b16 %v280
    %v320 = vunpack.c.l.b16 %v281
    %v321 = vunpack.c.l.b16 %v282
    %v322 = vunpack.c.l.b16 %v283
    %v323 = vpack.c.b16 %v308, %v307
    %v324 = vpack.c.b16 %v310, %v309
    %v325 = vpack.c.b16 %v312, %v311
    %v326 = vpack.c.b16 %v314, %v313
    %v327 = vpack.c.b16 %v316, %v315
    %v328 = vpack.c.b16 %v318, %v317
    %v329 = vpack.c.b16 %v320, %v319
    %v330 = vpack.c.b16 %v322, %v321
    %339 = vmatprep.subr.bf16.mxu0 0
    %340 = vmatpush1.bf16.msra.mxu0 %v330
    %341 = vmatprep.subr.bf16.mxu0 0
    %342 = vmatpush1.bf16.msra.mxu0 %v329
    %343 = vmatprep.subr.bf16.mxu0 0
    %344 = vmatpush1.bf16.msra.mxu0 %v328
    %345 = vmatprep.subr.bf16.mxu0 0
    %346 = vmatpush1.bf16.msra.mxu0 %v327
    %347 = vmatprep.subr.bf16.mxu0 0
    %348 = vmatpush1.bf16.msra.mxu0 %v326
    %349 = vmatprep.subr.bf16.mxu0 0
    %350 = vmatpush1.bf16.msra.mxu0 %v325
    %351 = vmatprep.subr.bf16.mxu0 0
    %352 = vmatpush1.bf16.msra.mxu0 %v324
    %353 = vmatprep.subr.bf16.mxu0 0
    %354 = vmatpush1.bf16.msra.mxu0 %v323
    %355 = vmatprep.subr.bf16.mxu0 0
    %356 = vmatpush2.bf16.msra.mxu0 0
    %357 = vmatprep.subr.bf16.mxu0 0
    %358 = vmatpush2.bf16.msra.mxu0 0
    %359 = vmatprep.subr.bf16.mxu0 0
    %360 = vmatpush2.bf16.msra.mxu0 0
    %361 = vmatprep.subr.bf16.mxu0 0
    %362 = vmatpush2.bf16.msra.mxu0 0
    %363 = vmatprep.subr.bf16.mxu0 0
    %364 = vmatpush2.bf16.msra.mxu0 0
    %365 = vmatprep.subr.bf16.mxu0 0
    %366 = vmatpush2.bf16.msra.mxu0 0
    %367 = vmatprep.subr.bf16.mxu0 0
    %368 = vmatpush2.bf16.msra.mxu0 0
    %369 = vmatprep.subr.bf16.mxu0 0
    %370 = vmatpush2.bf16.msra.mxu0 0
    %371 = vmatprep.mubr.bf16.mxu0 0
    %372 = vmatmul.mubr.bf16.gmra.mxu0 %v267
    %v373 = vpop.f32.mrf.mxu0
    %v374 = vadd.f32 %v289, %v373
    %v375 = vpop.f32.mrf.mxu0
    %v376 = vpop.f32.mrf.mxu0
    %v377 = vadd.f32 %v289, %v376
    %v378 = vpop.f32.mrf.mxu0
    %379 = vdwg.mxu0
    %v380 = vmax.f32 %v374, 0.0
    %v381 = vmax.f32 %v377, 0.0
    %v382 = vpack.c.bf16 %v381, %v380
    %v383 = vld [vmem:[#allocation8] sm:$0xf]
    %v384 = vld [vmem:[#allocation8 + $0x4] sm:$0xf]
    %v385 = vld [vmem:[#allocation8 + $0x8] sm:$0xf]
    %v386 = vld [vmem:[#allocation8 + $0xc] sm:$0xf]
    %v387 = vld [vmem:[#allocation8 + $0x10] sm:$0xf]
    %v388 = vld [vmem:[#allocation8 + $0x14] sm:$0xf]
    %v389 = vld [vmem:[#allocation8 + $0x18] sm:$0xf]
    %v390 = vld [vmem:[#allocation8 + $0x1c] sm:$0xf]
    %v391 = vld [vmem:[#allocation8 + $0x20] sm:$0xf]
    %v392 = vld [vmem:[#allocation8 + $0x24] sm:$0xf]
    %v393 = vld [vmem:[#allocation8 + $0x28] sm:$0xf]
    %v394 = vld [vmem:[#allocation8 + $0x2c] sm:$0xf]
    %v395 = vld [vmem:[#allocation8 + $0x30] sm:$0xf]
    %v396 = vld [vmem:[#allocation8 + $0x34] sm:$0xf]
    %v397 = vld [vmem:[#allocation8 + $0x38] sm:$0xf]
    %v398 = vld [vmem:[#allocation8 + $0x3c] sm:$0xf]
    %v399 = vld [vmem:[%s6] sm:$0x1]
    %v401 = vlaneseq
    %v402 = vshrl.u32 %v401, 7
    %v403 = vsub.s32 0, %v402
    %v404 = vrot.slane %v399, %v403
    %v422 = vunpack.c.l.b16 %v383
    %v423 = vunpack.c.l.b16 %v384
    %v424 = vunpack.c.l.b16 %v385
    %v425 = vunpack.c.l.b16 %v386
    %v426 = vunpack.c.l.b16 %v387
    %v427 = vunpack.c.l.b16 %v388
    %v428 = vunpack.c.l.b16 %v389
    %v429 = vunpack.c.l.b16 %v390
    %v430 = vunpack.c.l.b16 %v391
    %v431 = vunpack.c.l.b16 %v392
    %v432 = vunpack.c.l.b16 %v393
    %v433 = vunpack.c.l.b16 %v394
    %v434 = vunpack.c.l.b16 %v395
    %v435 = vunpack.c.l.b16 %v396
    %v436 = vunpack.c.l.b16 %v397
    %v437 = vunpack.c.l.b16 %v398
    %v438 = vpack.c.b16 %v423, %v422
    %v439 = vpack.c.b16 %v425, %v424
    %v440 = vpack.c.b16 %v427, %v426
    %v441 = vpack.c.b16 %v429, %v428
    %v442 = vpack.c.b16 %v431, %v430
    %v443 = vpack.c.b16 %v433, %v432
    %v444 = vpack.c.b16 %v435, %v434
    %v445 = vpack.c.b16 %v437, %v436
    %454 = vmatprep.subr.bf16.mxu0 0
    %455 = vmatpush1.bf16.msra.mxu0 %v445
    %456 = vmatprep.subr.bf16.mxu0 0
    %457 = vmatpush1.bf16.msra.mxu0 %v444
    %458 = vmatprep.subr.bf16.mxu0 0
    %459 = vmatpush1.bf16.msra.mxu0 %v443
    %460 = vmatprep.subr.bf16.mxu0 0
    %461 = vmatpush1.bf16.msra.mxu0 %v442
    %462 = vmatprep.subr.bf16.mxu0 0
    %463 = vmatpush1.bf16.msra.mxu0 %v441
    %464 = vmatprep.subr.bf16.mxu0 0
    %465 = vmatpush1.bf16.msra.mxu0 %v440
    %466 = vmatprep.subr.bf16.mxu0 0
    %467 = vmatpush1.bf16.msra.mxu0 %v439
    %468 = vmatprep.subr.bf16.mxu0 0
    %469 = vmatpush1.bf16.msra.mxu0 %v438
    %470 = vmatprep.subr.bf16.mxu0 0
    %471 = vmatpush2.bf16.msra.mxu0 0
    %472 = vmatprep.subr.bf16.mxu0 0
    %473 = vmatpush2.bf16.msra.mxu0 0
    %474 = vmatprep.subr.bf16.mxu0 0
    %475 = vmatpush2.bf16.msra.mxu0 0
    %476 = vmatprep.subr.bf16.mxu0 0
    %477 = vmatpush2.bf16.msra.mxu0 0
    %478 = vmatprep.subr.bf16.mxu0 0
    %479 = vmatpush2.bf16.msra.mxu0 0
    %480 = vmatprep.subr.bf16.mxu0 0
    %481 = vmatpush2.bf16.msra.mxu0 0
    %482 = vmatprep.subr.bf16.mxu0 0
    %483 = vmatpush2.bf16.msra.mxu0 0
    %484 = vmatprep.subr.bf16.mxu0 0
    %485 = vmatpush2.bf16.msra.mxu0 0
    %486 = vmatprep.mubr.bf16.mxu0 0
    %487 = vmatmul.mubr.bf16.gmra.mxu0 %v382
    %v488 = vpop.f32.mrf.mxu0
    %v489 = vadd.f32 %v404, %v488
    %v490 = vpop.f32.mrf.mxu0
    %v491 = vpop.f32.mrf.mxu0
    %v492 = vadd.f32 %v404, %v491
    %v493 = vpop.f32.mrf.mxu0
    %494 = vdwg.mxu0
    %495 = vst [vmem:[#allocation10] sm:$0xff] %v489
    %496 = vst [vmem:[#allocation10 + $0x8] sm:$0xff] %v492
    // Predicated region
    $region46: #{tpu_custom_call.1} parent=1 // pred_check
      _
    $region47: #{tpu_custom_call.1} parent=1 // pred_check_branch
      %498 = sbr.rel (0) target = $region49
    $region48: #{tpu_custom_call.1} parent=1 // pred_region
      %s500 = ssub.s32 256, 256
      %501 = vsyncadd [#allocation4], %s500
      %s502 = sshll.u32 [#allocation10], 4
      %s503 = int_to_ptr.vmem [resolvable:$true] %s502
      %508 = dma.vmem_to_hbm [thread:$0]  %s503, 256, %s7, [#allocation4], 128, 128, 8
    $region49: #{tpu_custom_call.1} parent=1 // pred_fallthru
      _
    // Predicated region
    $region50: #{tpu_custom_call.1} parent=1 // pred_check
      _
    $region51: #{tpu_custom_call.1} parent=1 // pred_check_branch
      %510 = sbr.rel (0) target = $region53
    $region52: #{tpu_custom_call.1} parent=1 // pred_region
      %511 = dma.done [#allocation4], 256
    $region53: #{tpu_custom_call.1} parent=1 // pred_fallthru
      _
    %512 = vsyncpa [#allocation3], 1
    %513 = vsyncpa [#allocation6], 1
    %514 = vsyncpa [#allocation9], 1
    %515 = vsyncpa [#allocation4], 1

// kernel: tpu_custom_call.1
$region0: #{tpu_custom_call.1}
  #allocation0 [shape = 'u32[]', space=smem, size = 0x4, offset = 0x4, fixed_abs, tag = 'smem constant byte address 0x4 - core index']
  #allocation1 [shape = 'u32[144,128]{1,0:T(1,128)}', space=vmem, size = 0x12000, scoped, tag = 'internal scratch']
  %s0 = inlined_call_operand.hbm [shape: f32[16,256], index: 0, kind: input, shape index: {}]
  %s1 = inlined_call_operand.hbm [shape: bf16[256,128], index: 1, kind: input, shape index: {}]
  %s2 = inlined_call_operand.vmem [shape: f32[1,128], index: 2, kind: input, shape index: {}]
  %s3 = inlined_call_operand.hbm [shape: bf16[128,128], index: 3, kind: input, shape index: {}]
  %s4 = inlined_call_operand.vmem [shape: f32[1,128], index: 4, kind: input, shape index: {}]
  %s5 = inlined_call_operand.hbm [shape: bf16[128,128], index: 5, kind: input, shape index: {}]
  %s6 = inlined_call_operand.vmem [shape: f32[1,128], index: 6, kind: input, shape index: {}]
  %s7 = inlined_call_operand.hbm [shape: f32[16,128], index: 7, kind: output, shape index: {}]
  %s8 = sld [smem:[#allocation0]]
  $region54: #{tpu_custom_call.1} parent=0
    _
  %s10 = ssub.s32 1, %s8
  %s11 = scalar_select 0, %s10, %s8
  $region1: #{tpu_custom_call.1} parent=0
    #allocation2 [shape = 'u8[16384]{0}', space=vmem, size = 0x4000, scoped, tag = 'input window, operand 0, single buffered']
    #allocation3 [shape = 's32[1]{0}', space=sflag, size = 0x4, scoped, tag = 'scoped memory for tpu_custom_call.1']
    #allocation4 [shape = 's32[1]{0}', space=sflag, size = 0x4, scoped, tag = 'scoped memory for tpu_custom_call.1']
    #allocation5 [shape = 'u8[65536]{0}', space=vmem, size = 0x10000, scoped, tag = 'input window, operand 1, single buffered']
    #allocation6 [shape = 's32[1]{0}', space=sflag, size = 0x4, scoped, tag = 'scoped memory for tpu_custom_call.1']
    #allocation7 [shape = 'u8[32768]{0}', space=vmem, size = 0x8000, scoped, tag = 'input window, operand 3, single buffered']
    #allocation8 [shape = 'u8[32768]{0}', space=vmem, size = 0x8000, scoped, tag = 'input window, operand 5, single buffered']
    #allocation9 [shape = 's32[1]{0}', space=sflag, size = 0x4, scoped, tag = 'scoped memory for tpu_custom_call.1']
    #allocation10 [shape = 'u8[8192]{0}', space=vmem, size = 0x2000, scoped, tag = 'output window, operand 0, single buffered']
    %12 = vsyncpa [#allocation3], 0
    %13 = vsyncpa [#allocation6], 0
    %14 = vsyncpa [#allocation9], 0
    %15 = vsyncpa [#allocation4], 0
    // Predicated region
    $region2: #{tpu_custom_call.1} parent=1 // pred_check
      _
    $region3: #{tpu_custom_call.1} parent=1 // pred_check_branch
      %17 = sbr.rel (0) target = $region5
    $region4: #{tpu_custom_call.1} parent=1 // pred_region
      %s19 = ssub.s32 512, 512
      %20 = vsyncadd [#allocation3], %s19
      %s21 = sshll.u32 [#allocation2], 4
      %s22 = int_to_ptr.vmem [resolvable:$true] %s21
      %27 = dma.hbm_to_vmem [thread:$0]  %s0, 512, %s22, [#allocation3], 256, 256, 16
    $region5: #{tpu_custom_call.1} parent=1 // pred_fallthru
      _
    // Predicated region
    $region6: #{tpu_custom_call.1} parent=1 // pred_check
      _
    $region7: #{tpu_custom_call.1} parent=1 // pred_check_branch
      %29 = sbr.rel (0) target = $region9
    $region8: #{tpu_custom_call.1} parent=1 // pred_region
      %s31 = ssub.s32 2048, 2048
      %32 = vsyncadd [#allocation6], %s31
      %s33 = sshll.u32 [#allocation5], 4
      %s34 = int_to_ptr.vmem [resolvable:$true] %s33
      %39 = dma.hbm_to_vmem [thread:$0]  %s1, 2048, %s34, [#allocation6], 64, 64, 4
    $region9: #{tpu_custom_call.1} parent=1 // pred_fallthru
      _
    // Predicated region
    $region10: #{tpu_custom_call.1} parent=1 // pred_check
      _
    $region11: #{tpu_custom_call.1} parent=1 // pred_check_branch
      %41 = sbr.rel (0) target = $region13
    $region12: #{tpu_custom_call.1} parent=1 // pred_region
      _
    $region13: #{tpu_custom_call.1} parent=1 // pred_fallthru
      _
    // Predicated region
    $region14: #{tpu_custom_call.1} parent=1 // pred_check
      _
    $region15: #{tpu_custom_call.1} parent=1 // pred_check_branch
      %43 = sbr.rel (0) target = $region17
    $region16: #{tpu_custom_call.1} parent=1 // pred_region
      %s45 = ssub.s32 1024, 1024
      %46 = vsyncadd [#allocation6], %s45
      %s47 = sshll.u32 [#allocation7], 4
      %s48 = int_to_ptr.vmem [resolvable:$true] %s47
      %53 = dma.hbm_to_vmem [thread:$0]  %s3, 1024, %s48, [#allocation6], 64, 64, 4
    $region17: #{tpu_custom_call.1} parent=1 // pred_fallthru
      _
    // Predicated region
    $region18: #{tpu_custom_call.1} parent=1 // pred_check
      _
    $region19: #{tpu_custom_call.1} parent=1 // pred_check_branch
      %55 = sbr.rel (0) target = $region21
    $region20: #{tpu_custom_call.1} parent=1 // pred_region
      _
    $region21: #{tpu_custom_call.1} parent=1 // pred_fallthru
      _
    // Predicated region
    $region22: #{tpu_custom_call.1} parent=1 // pred_check
      _
    $region23: #{tpu_custom_call.1} parent=1 // pred_check_branch
      %57 = sbr.rel (0) target = $region25
    $region24: #{tpu_custom_call.1} parent=1 // pred_region
      %s59 = ssub.s32 1024, 1024
      %60 = vsyncadd [#allocation9], %s59
      %s61 = sshll.u32 [#allocation8], 4
      %s62 = int_to_ptr.vmem [resolvable:$true] %s61
      %67 = dma.hbm_to_vmem [thread:$0]  %s5, 1024, %s62, [#allocation9], 64, 64, 4
    $region25: #{tpu_custom_call.1} parent=1 // pred_fallthru
      _
    // Predicated region
    $region26: #{tpu_custom_call.1} parent=1 // pred_check
      _
    $region27: #{tpu_custom_call.1} parent=1 // pred_check_branch
      %69 = sbr.rel (0) target = $region29
    $region28: #{tpu_custom_call.1} parent=1 // pred_region
      _
    $region29: #{tpu_custom_call.1} parent=1 // pred_fallthru
      _
    // Predicated region
    $region30: #{tpu_custom_call.1} parent=1 // pred_check
      _
    $region31: #{tpu_custom_call.1} parent=1 // pred_check_branch
      %71 = sbr.rel (0) target = $region33
    $region32: #{tpu_custom_call.1} parent=1 // pred_region
      %72 = dma.done [#allocation3], 512
    $region33: #{tpu_custom_call.1} parent=1 // pred_fallthru
      _
    // Predicated region
    $region34: #{tpu_custom_call.1} parent=1 // pred_check
      _
    $region35: #{tpu_custom_call.1} parent=1 // pred_check_branch
      %74 = sbr.rel (0) target = $region37
    $region36: #{tpu_custom_call.1} parent=1 // pred_region
      %75 = dma.done [#allocation6], 2048
    $region37: #{tpu_custom_call.1} parent=1 // pred_fallthru
      _
    // Predicated region
    $region38: #{tpu_custom_call.1} parent=1 // pred_check
      _
    $region39: #{tpu_custom_call.1} parent=1 // pred_check_branch
      %77 = sbr.rel (0) target = $region41
    $region40: #{tpu_custom_call.1} parent=1 // pred_region
      %78 = dma.done [#allocation6], 1024
    $region41: #{tpu_custom_call.1} parent=1 // pred_fallthru
      _
    // Predicated region
    $region42: #{tpu_custom_call.1} parent=1 // pred_check
      _
    $region43: #{tpu_custom_call.1} parent=1 // pred_check_branch
      %80 = sbr.rel (0) target = $region45
    $region44: #{tpu_custom_call.1} parent=1 // pred_region
      %81 = dma.done [#allocation9], 1024
    $region45: #{tpu_custom_call.1} parent=1 // pred_fallthru
      _
    %v83 = vld [vmem:[#allocation2] sm:$0xff]
    %v84 = vld [vmem:[#allocation2 + $0x8] sm:$0xff]
    %v85 = vld [vmem:[#allocation2 + $0x10] sm:$0xff]
    %v86 = vld [vmem:[#allocation2 + $0x18] sm:$0xff]
    %v87 = vpack.c.bf16 %v85, %v83
    %v88 = vpack.c.bf16 %v86, %v84
    %v89 = vld [vmem:[#allocation5] sm:$0xf]
    %v90 = vld [vmem:[#allocation5 + $0x4] sm:$0xf]
    %v91 = vld [vmem:[#allocation5 + $0x8] sm:$0xf]
    %v92 = vld [vmem:[#allocation5 + $0xc] sm:$0xf]
    %v93 = vld [vmem:[#allocation5 + $0x10] sm:$0xf]
    %v94 = vld [vmem:[#allocation5 + $0x14] sm:$0xf]
    %v95 = vld [vmem:[#allocation5 + $0x18] sm:$0xf]
    %v96 = vld [vmem:[#allocation5 + $0x1c] sm:$0xf]
    %v97 = vld [vmem:[#allocation5 + $0x20] sm:$0xf]
    %v98 = vld [vmem:[#allocation5 + $0x24] sm:$0xf]
    %v99 = vld [vmem:[#allocation5 + $0x28] sm:$0xf]
    %v100 = vld [vmem:[#allocation5 + $0x2c] sm:$0xf]
    %v101 = vld [vmem:[#allocation5 + $0x30] sm:$0xf]
    %v102 = vld [vmem:[#allocation5 + $0x34] sm:$0xf]
    %v103 = vld [vmem:[#allocation5 + $0x38] sm:$0xf]
    %v104 = vld [vmem:[#allocation5 + $0x3c] sm:$0xf]
    %v105 = vld [vmem:[#allocation5 + $0x40] sm:$0xf]
    %v106 = vld [vmem:[#allocation5 + $0x44] sm:$0xf]
    %v107 = vld [vmem:[#allocation5 + $0x48] sm:$0xf]
    %v108 = vld [vmem:[#allocation5 + $0x4c] sm:$0xf]
    %v109 = vld [vmem:[#allocation5 + $0x50] sm:$0xf]
    %v110 = vld [vmem:[#allocation5 + $0x54] sm:$0xf]
    %v111 = vld [vmem:[#allocation5 + $0x58] sm:$0xf]
    %v112 = vld [vmem:[#allocation5 + $0x5c] sm:$0xf]
    %v113 = vld [vmem:[#allocation5 + $0x60] sm:$0xf]
    %v114 = vld [vmem:[#allocation5 + $0x64] sm:$0xf]
    %v115 = vld [vmem:[#allocation5 + $0x68] sm:$0xf]
    %v116 = vld [vmem:[#allocation5 + $0x6c] sm:$0xf]
    %v117 = vld [vmem:[#allocation5 + $0x70] sm:$0xf]
    %v118 = vld [vmem:[#allocation5 + $0x74] sm:$0xf]
    %v119 = vld [vmem:[#allocation5 + $0x78] sm:$0xf]
    %v120 = vld [vmem:[#allocation5 + $0x7c] sm:$0xf]
    %v121 = vld [vmem:[%s2] sm:$0x1]
    %v123 = vlaneseq
    %v124 = vshrl.u32 %v123, 7
    %v125 = vsub.s32 0, %v124
    %v126 = vrot.slane %v121, %v125
    %v160 = vunpack.c.l.b16 %v89
    %v161 = vunpack.c.l.b16 %v90
    %v162 = vunpack.c.l.b16 %v91
    %v163 = vunpack.c.l.b16 %v92
    %v164 = vunpack.c.l.b16 %v93
    %v165 = vunpack.c.l.b16 %v94
    %v166 = vunpack.c.l.b16 %v95
    %v167 = vunpack.c.l.b16 %v96
    %v168 = vunpack.c.l.b16 %v97
    %v169 = vunpack.c.l.b16 %v98
    %v170 = vunpack.c.l.b16 %v99
    %v171 = vunpack.c.l.b16 %v100
    %v172 = vunpack.c.l.b16 %v101
    %v173 = vunpack.c.l.b16 %v102
    %v174 = vunpack.c.l.b16 %v103
    %v175 = vunpack.c.l.b16 %v104
    %v176 = vunpack.c.l.b16 %v105
    %v177 = vunpack.c.l.b16 %v106
    %v178 = vunpack.c.l.b16 %v107
    %v179 = vunpack.c.l.b16 %v108
    %v180 = vunpack.c.l.b16 %v109
    %v181 = vunpack.c.l.b16 %v110
    %v182 = vunpack.c.l.b16 %v111
    %v183 = vunpack.c.l.b16 %v112
    %v184 = vunpack.c.l.b16 %v113
    %v185 = vunpack.c.l.b16 %v114
    %v186 = vunpack.c.l.b16 %v115
    %v187 = vunpack.c.l.b16 %v116
    %v188 = vunpack.c.l.b16 %v117
    %v189 = vunpack.c.l.b16 %v118
    %v190 = vunpack.c.l.b16 %v119
    %v191 = vunpack.c.l.b16 %v120
    %v192 = vpack.c.b16 %v161, %v160
    %v193 = vpack.c.b16 %v163, %v162
    %v194 = vpack.c.b16 %v165, %v164
    %v195 = vpack.c.b16 %v167, %v166
    %v196 = vpack.c.b16 %v169, %v168
    %v197 = vpack.c.b16 %v171, %v170
    %v198 = vpack.c.b16 %v173, %v172
    %v199 = vpack.c.b16 %v175, %v174
    %v200 = vpack.c.b16 %v177, %v176
    %v201 = vpack.c.b16 %v179, %v178
    %v202 = vpack.c.b16 %v181, %v180
    %v203 = vpack.c.b16 %v183, %v182
    %v204 = vpack.c.b16 %v185, %v184
    %v205 = vpack.c.b16 %v187, %v186
    %v206 = vpack.c.b16 %v189, %v188
    %v207 = vpack.c.b16 %v191, %v190
    %224 = vmatprep.subr.bf16.mxu0 0
    %225 = vmatpush1.bf16.msra.mxu0 %v199
    %226 = vmatprep.subr.bf16.mxu0 0
    %227 = vmatpush1.bf16.msra.mxu0 %v198
    %228 = vmatprep.subr.bf16.mxu0 0
    %229 = vmatpush1.bf16.msra.mxu0 %v197
    %230 = vmatprep.subr.bf16.mxu0 0
    %231 = vmatpush1.bf16.msra.mxu0 %v196
    %232 = vmatprep.subr.bf16.mxu0 0
    %233 = vmatpush1.bf16.msra.mxu0 %v195
    %234 = vmatprep.subr.bf16.mxu0 0
    %235 = vmatpush1.bf16.msra.mxu0 %v194
    %236 = vmatprep.subr.bf16.mxu0 0
    %237 = vmatpush1.bf16.msra.mxu0 %v193
    %238 = vmatprep.subr.bf16.mxu0 0
    %239 = vmatpush1.bf16.msra.mxu0 %v192
    %240 = vmatprep.subr.bf16.mxu0 0
    %241 = vmatpush2.bf16.msra.mxu0 %v207
    %242 = vmatprep.subr.bf16.mxu0 0
    %243 = vmatpush2.bf16.msra.mxu0 %v206
    %244 = vmatprep.subr.bf16.mxu0 0
    %245 = vmatpush2.bf16.msra.mxu0 %v205
    %246 = vmatprep.subr.bf16.mxu0 0
    %247 = vmatpush2.bf16.msra.mxu0 %v204
    %248 = vmatprep.subr.bf16.mxu0 0
    %249 = vmatpush2.bf16.msra.mxu0 %v203
    %250 = vmatprep.subr.bf16.mxu0 0
    %251 = vmatpush2.bf16.msra.mxu0 %v202
    %252 = vmatprep.subr.bf16.mxu0 0
    %253 = vmatpush2.bf16.msra.mxu0 %v201
    %254 = vmatprep.subr.bf16.mxu0 0
    %255 = vmatpush2.bf16.msra.mxu0 %v200
    %256 = vmatprep.mubr.bf16.mxu0 %v88
    %257 = vmatmul.mubr.bf16.gmra.mxu0 %v87
    %v258 = vpop.f32.mrf.mxu0
    %v259 = vadd.f32 %v126, %v258
    %v260 = vpop.f32.mrf.mxu0
    %v261 = vpop.f32.mrf.mxu0
    %v262 = vadd.f32 %v126, %v261
    %v263 = vpop.f32.mrf.mxu0
    %264 = vdwg.mxu0
    %v265 = vmax.f32 %v259, 0.0
    %v266 = vmax.f32 %v262, 0.0
    %v267 = vpack.c.bf16 %v266, %v265
    %v268 = vld [vmem:[#allocation7] sm:$0xf]
    %v269 = vld [vmem:[#allocation7 + $0x4] sm:$0xf]
    %v270 = vld [vmem:[#allocation7 + $0x8] sm:$0xf]
    %v271 = vld [vmem:[#allocation7 + $0xc] sm:$0xf]
    %v272 = vld [vmem:[#allocation7 + $0x10] sm:$0xf]
    %v273 = vld [vmem:[#allocation7 + $0x14] sm:$0xf]
    %v274 = vld [vmem:[#allocation7 + $0x18] sm:$0xf]
    %v275 = vld [vmem:[#allocation7 + $0x1c] sm:$0xf]
    %v276 = vld [vmem:[#allocation7 + $0x20] sm:$0xf]
    %v277 = vld [vmem:[#allocation7 + $0x24] sm:$0xf]
    %v278 = vld [vmem:[#allocation7 + $0x28] sm:$0xf]
    %v279 = vld [vmem:[#allocation7 + $0x2c] sm:$0xf]
    %v280 = vld [vmem:[#allocation7 + $0x30] sm:$0xf]
    %v281 = vld [vmem:[#allocation7 + $0x34] sm:$0xf]
    %v282 = vld [vmem:[#allocation7 + $0x38] sm:$0xf]
    %v283 = vld [vmem:[#allocation7 + $0x3c] sm:$0xf]
    %v284 = vld [vmem:[%s4] sm:$0x1]
    %v286 = vlaneseq
    %v287 = vshrl.u32 %v286, 7
    %v288 = vsub.s32 0, %v287
    %v289 = vrot.slane %v284, %v288
    %v307 = vunpack.c.l.b16 %v268
    %v308 = vunpack.c.l.b16 %v269
    %v309 = vunpack.c.l.b16 %v270
    %v310 = vunpack.c.l.b16 %v271
    %v311 = vunpack.c.l.b16 %v272
    %v312 = vunpack.c.l.b16 %v273
    %v313 = vunpack.c.l.b16 %v274
    %v314 = vunpack.c.l.b16 %v275
    %v315 = vunpack.c.l.b16 %v276
    %v316 = vunpack.c.l.b16 %v277
    %v317 = vunpack.c.l.b16 %v278
    %v318 = vunpack.c.l.b16 %v279
    %v319 = vunpack.c.l.b16 %v280
    %v320 = vunpack.c.l.b16 %v281
    %v321 = vunpack.c.l.b16 %v282
    %v322 = vunpack.c.l.b16 %v283
    %v323 = vpack.c.b16 %v308, %v307
    %v324 = vpack.c.b16 %v310, %v309
    %v325 = vpack.c.b16 %v312, %v311
    %v326 = vpack.c.b16 %v314, %v313
    %v327 = vpack.c.b16 %v316, %v315
    %v328 = vpack.c.b16 %v318, %v317
    %v329 = vpack.c.b16 %v320, %v319
    %v330 = vpack.c.b16 %v322, %v321
    %339 = vmatprep.subr.bf16.mxu0 0
    %340 = vmatpush1.bf16.msra.mxu0 %v330
    %341 = vmatprep.subr.bf16.mxu0 0
    %342 = vmatpush1.bf16.msra.mxu0 %v329
    %343 = vmatprep.subr.bf16.mxu0 0
    %344 = vmatpush1.bf16.msra.mxu0 %v328
    %345 = vmatprep.subr.bf16.mxu0 0
    %346 = vmatpush1.bf16.msra.mxu0 %v327
    %347 = vmatprep.subr.bf16.mxu0 0
    %348 = vmatpush1.bf16.msra.mxu0 %v326
    %349 = vmatprep.subr.bf16.mxu0 0
    %350 = vmatpush1.bf16.msra.mxu0 %v325
    %351 = vmatprep.subr.bf16.mxu0 0
    %352 = vmatpush1.bf16.msra.mxu0 %v324
    %353 = vmatprep.subr.bf16.mxu0 0
    %354 = vmatpush1.bf16.msra.mxu0 %v323
    %355 = vmatprep.subr.bf16.mxu0 0
    %356 = vmatpush2.bf16.msra.mxu0 0
    %357 = vmatprep.subr.bf16.mxu0 0
    %358 = vmatpush2.bf16.msra.mxu0 0
    %359 = vmatprep.subr.bf16.mxu0 0
    %360 = vmatpush2.bf16.msra.mxu0 0
    %361 = vmatprep.subr.bf16.mxu0 0
    %362 = vmatpush2.bf16.msra.mxu0 0
    %363 = vmatprep.subr.bf16.mxu0 0
    %364 = vmatpush2.bf16.msra.mxu0 0
    %365 = vmatprep.subr.bf16.mxu0 0
    %366 = vmatpush2.bf16.msra.mxu0 0
    %367 = vmatprep.subr.bf16.mxu0 0
    %368 = vmatpush2.bf16.msra.mxu0 0
    %369 = vmatprep.subr.bf16.mxu0 0
    %370 = vmatpush2.bf16.msra.mxu0 0
    %371 = vmatprep.mubr.bf16.mxu0 0
    %372 = vmatmul.mubr.bf16.gmra.mxu0 %v267
    %v373 = vpop.f32.mrf.mxu0
    %v374 = vadd.f32 %v289, %v373
    %v375 = vpop.f32.mrf.mxu0
    %v376 = vpop.f32.mrf.mxu0
    %v377 = vadd.f32 %v289, %v376
    %v378 = vpop.f32.mrf.mxu0
    %379 = vdwg.mxu0
    %v380 = vmax.f32 %v374, 0.0
    %v381 = vmax.f32 %v377, 0.0
    %v382 = vpack.c.bf16 %v381, %v380
    %v383 = vld [vmem:[#allocation8] sm:$0xf]
    %v384 = vld [vmem:[#allocation8 + $0x4] sm:$0xf]
    %v385 = vld [vmem:[#allocation8 + $0x8] sm:$0xf]
    %v386 = vld [vmem:[#allocation8 + $0xc] sm:$0xf]
    %v387 = vld [vmem:[#allocation8 + $0x10] sm:$0xf]
    %v388 = vld [vmem:[#allocation8 + $0x14] sm:$0xf]
    %v389 = vld [vmem:[#allocation8 + $0x18] sm:$0xf]
    %v390 = vld [vmem:[#allocation8 + $0x1c] sm:$0xf]
    %v391 = vld [vmem:[#allocation8 + $0x20] sm:$0xf]
    %v392 = vld [vmem:[#allocation8 + $0x24] sm:$0xf]
    %v393 = vld [vmem:[#allocation8 + $0x28] sm:$0xf]
    %v394 = vld [vmem:[#allocation8 + $0x2c] sm:$0xf]
    %v395 = vld [vmem:[#allocation8 + $0x30] sm:$0xf]
    %v396 = vld [vmem:[#allocation8 + $0x34] sm:$0xf]
    %v397 = vld [vmem:[#allocation8 + $0x38] sm:$0xf]
    %v398 = vld [vmem:[#allocation8 + $0x3c] sm:$0xf]
    %v399 = vld [vmem:[%s6] sm:$0x1]
    %v401 = vlaneseq
    %v402 = vshrl.u32 %v401, 7
    %v403 = vsub.s32 0, %v402
    %v404 = vrot.slane %v399, %v403
    %v422 = vunpack.c.l.b16 %v383
    %v423 = vunpack.c.l.b16 %v384
    %v424 = vunpack.c.l.b16 %v385
    %v425 = vunpack.c.l.b16 %v386
    %v426 = vunpack.c.l.b16 %v387
    %v427 = vunpack.c.l.b16 %v388
    %v428 = vunpack.c.l.b16 %v389
    %v429 = vunpack.c.l.b16 %v390
    %v430 = vunpack.c.l.b16 %v391
    %v431 = vunpack.c.l.b16 %v392
    %v432 = vunpack.c.l.b16 %v393
    %v433 = vunpack.c.l.b16 %v394
    %v434 = vunpack.c.l.b16 %v395
    %v435 = vunpack.c.l.b16 %v396
    %v436 = vunpack.c.l.b16 %v397
    %v437 = vunpack.c.l.b16 %v398
    %v438 = vpack.c.b16 %v423, %v422
    %v439 = vpack.c.b16 %v425, %v424
    %v440 = vpack.c.b16 %v427, %v426
    %v441 = vpack.c.b16 %v429, %v428
    %v442 = vpack.c.b16 %v431, %v430
    %v443 = vpack.c.b16 %v433, %v432
    %v444 = vpack.c.b16 %v435, %v434
    %v445 = vpack.c.b16 %v437, %v436
    %454 = vmatprep.subr.bf16.mxu0 0
    %455 = vmatpush1.bf16.msra.mxu0 %v445
    %456 = vmatprep.subr.bf16.mxu0 0
    %457 = vmatpush1.bf16.msra.mxu0 %v444
    %458 = vmatprep.subr.bf16.mxu0 0
    %459 = vmatpush1.bf16.msra.mxu0 %v443
    %460 = vmatprep.subr.bf16.mxu0 0
    %461 = vmatpush1.bf16.msra.mxu0 %v442
    %462 = vmatprep.subr.bf16.mxu0 0
    %463 = vmatpush1.bf16.msra.mxu0 %v441
    %464 = vmatprep.subr.bf16.mxu0 0
    %465 = vmatpush1.bf16.msra.mxu0 %v440
    %466 = vmatprep.subr.bf16.mxu0 0
    %467 = vmatpush1.bf16.msra.mxu0 %v439
    %468 = vmatprep.subr.bf16.mxu0 0
    %469 = vmatpush1.bf16.msra.mxu0 %v438
    %470 = vmatprep.subr.bf16.mxu0 0
    %471 = vmatpush2.bf16.msra.mxu0 0
    %472 = vmatprep.subr.bf16.mxu0 0
    %473 = vmatpush2.bf16.msra.mxu0 0
    %474 = vmatprep.subr.bf16.mxu0 0
    %475 = vmatpush2.bf16.msra.mxu0 0
    %476 = vmatprep.subr.bf16.mxu0 0
    %477 = vmatpush2.bf16.msra.mxu0 0
    %478 = vmatprep.subr.bf16.mxu0 0
    %479 = vmatpush2.bf16.msra.mxu0 0
    %480 = vmatprep.subr.bf16.mxu0 0
    %481 = vmatpush2.bf16.msra.mxu0 0
    %482 = vmatprep.subr.bf16.mxu0 0
    %483 = vmatpush2.bf16.msra.mxu0 0
    %484 = vmatprep.subr.bf16.mxu0 0
    %485 = vmatpush2.bf16.msra.mxu0 0
    %486 = vmatprep.mubr.bf16.mxu0 0
    %487 = vmatmul.mubr.bf16.gmra.mxu0 %v382
    %v488 = vpop.f32.mrf.mxu0
    %v489 = vadd.f32 %v404, %v488
    %v490 = vpop.f32.mrf.mxu0
    %v491 = vpop.f32.mrf.mxu0
    %v492 = vadd.f32 %v404, %v491
    %v493 = vpop.f32.mrf.mxu0
    %494 = vdwg.mxu0
    %495 = vst [vmem:[#allocation10] sm:$0xff] %v489
    %496 = vst [vmem:[#allocation10 + $0x8] sm:$0xff] %v492
    // Predicated region
    $region46: #{tpu_custom_call.1} parent=1 // pred_check
      _
    $region47: #{tpu_custom_call.1} parent=1 // pred_check_branch
      %498 = sbr.rel (0) target = $region49
    $region48: #{tpu_custom_call.1} parent=1 // pred_region
      %s500 = ssub.s32 256, 256
      %501 = vsyncadd [#allocation4], %s500
      %s502 = sshll.u32 [#allocation10], 4
      %s503 = int_to_ptr.vmem [resolvable:$true] %s502
      %508 = dma.vmem_to_hbm [thread:$0]  %s503, 256, %s7, [#allocation4], 128, 128, 8
    $region49: #{tpu_custom_call.1} parent=1 // pred_fallthru
      _
    // Predicated region
    $region50: #{tpu_custom_call.1} parent=1 // pred_check
      _
    $region51: #{tpu_custom_call.1} parent=1 // pred_check_branch
      %510 = sbr.rel (0) target = $region53
    $region52: #{tpu_custom_call.1} parent=1 // pred_region
      %511 = dma.done [#allocation4], 256
    $region53: #{tpu_custom_call.1} parent=1 // pred_fallthru
      _
    %512 = vsyncpa [#allocation3], 1
    %513 = vsyncpa [#allocation6], 1
    %514 = vsyncpa [#allocation9], 1
    %515 = vsyncpa [#allocation4], 1

</llo_original>
